<compile_context>
chip_gen: v6e
topology: v6e:2x2x1
jax: 0.10.0
libtpu: 0.0.40
codegen_flags: <defaults>
</compile_context>

<pallas_src>
import jax
import jax.numpy as jnp
from jax.experimental import pallas as pl
from jax.experimental.pallas import tpu as pltpu

_LANE = 128
_TILE_R_MAX = 4096        # 4096 rows x 128 lanes x 4 B = 2 MiB per f32 input tile
_MIN_PALLAS_ELEMS = 1 << 16   # below ~256 KiB f32, plain JAX fuses and wins


def _round_up(a: int, b: int) -> int:
    return ((a + b - 1) // b) * b


def _sublane_multiple(dtype) -> int:
    # Native packing tile in the sublane dim: 8 for 32-bit, 16 for 16-bit,
    # 32 for 8-bit dtypes.
    bits = jnp.dtype(dtype).itemsize * 8
    return max(8, 256 // bits)


def _upd_gelu_kernel(c_ref, x_ref, o_ref):
    # c_ref: (1,) scalar in SMEM; x_ref / o_ref: (tile_r, 128) VMEM tiles.
    # sigmoid(c*x)*x == 0.5*x*tanh(0.5*c*x) + 0.5*x  (single EUP tanh,
    # FMA-shaped VPU work; math in f32, I/O in the caller's dtype).
    c_half = 0.5 * c_ref[0]
    x = x_ref[...].astype(jnp.float32)
    hx = 0.5 * x
    o_ref[...] = (hx * jnp.tanh(c_half * x) + hx).astype(o_ref.dtype)


def _upd_gelu_2d(x2d: jax.Array, c_smem: jax.Array) -> jax.Array:
    rows, lane = x2d.shape
    sub = _sublane_multiple(x2d.dtype)
    tile_r = min(_TILE_R_MAX, _round_up(rows, sub))
    grid = (pl.cdiv(rows, tile_r),)
    nbytes = x2d.size * jnp.dtype(x2d.dtype).itemsize
    return pl.pallas_call(
        _upd_gelu_kernel,
        out_shape=jax.ShapeDtypeStruct((rows, lane), x2d.dtype),
        grid=grid,
        in_specs=[
            pl.BlockSpec(memory_space=pltpu.MemorySpace.SMEM),   # scalar const
            pl.BlockSpec((tile_r, lane), lambda i: (i, 0)),      # input tile
        ],
        out_specs=pl.BlockSpec((tile_r, lane), lambda i: (i, 0)),
        compiler_params=pltpu.CompilerParams(
            # "parallel" lets v7x shard row tiles across both TensorCores;
            # verify with a profile and switch to CORE_PARALLEL if one TC idles.
            dimension_semantics=("parallel",),
            vmem_limit_bytes=32 * 1024 * 1024,
        ),
        cost_estimate=pl.CostEstimate(
            flops=5 * x2d.size,
            transcendentals=x2d.size,
            bytes_accessed=2 * nbytes,
        ),
    )(c_smem, x2d)


def upd_gelu(x: jax.Array, constant_param: jax.Array,
             *, min_pallas_elems: int = _MIN_PALLAS_ELEMS) -> jax.Array:
    """Pallas implementation of upd_GELU.forward: sigmoid(c * x) * x."""
    n = x.size
    c = jnp.asarray(constant_param, jnp.float32).reshape(-1)[0]

    if n == 0:
        return x

    if n < min_pallas_elems or (n % _LANE) != 0:
        # Tiny inputs: pallas_call launch overhead dominates and blocks fusion
        # with the producer — plain JAX wins.  Ragged sizes (rare): XLA's fused
        # elementwise is already HBM-roofline-bound and avoids the extra
        # pad+slice pass the old Pallas ragged path needed.
        xf = x.astype(jnp.float32)
        return (jax.nn.sigmoid(c * xf) * xf).astype(x.dtype)

    # Common case (conv feature maps): row-major reshape is a free view;
    # exactly 2N bytes of HBM traffic, no pad, no slice.
    x2d = x.reshape(n // _LANE, _LANE)
    c_smem = jnp.reshape(c, (1,))
    return _upd_gelu_2d(x2d, c_smem).reshape(x.shape)


if __name__ == "__main__":
    key = jax.random.PRNGKey(0)
    k1, k2 = jax.random.split(key)

    # Matches nn.Parameter(torch.Tensor([1.702])).
    constant_param = jnp.array([1.702], dtype=jnp.float32)

    def ref_fn(x):
        return jax.nn.sigmoid(constant_param[0] * x) * x

    # 1) Spec-sized NCHW input, forced through the Pallas path (single block).
    x1 = jax.random.normal(key, (2, 4, 16, 16), dtype=jnp.float32)
    out1 = upd_gelu(x1, constant_param, min_pallas_elems=0)
    jax.block_until_ready(out1)
    assert out1.shape == x1.shape and out1.dtype == x1.dtype
    assert jnp.allclose(out1, ref_fn(x1), atol=1e-5, rtol=1e-5), "mismatch (f32 small)"

    # 2) Larger f32 activation: exercises the multi-step row-tiled grid and the
    #    default wrapper heuristics.
    x2 = jax.random.normal(k1, (8, 32, 64, 64), dtype=jnp.float32)  # 1M elems, 8192 rows
    out2 = upd_gelu(x2, constant_param)
    jax.block_until_ready(out2)
    assert jnp.allclose(out2, ref_fn(x2), atol=1e-5, rtol=1e-5), "mismatch (f32 large)"

    # 3) bf16 input: exercises the dtype-aware sublane rounding (tile multiple of 16).
    x3 = jax.random.normal(k2, (2, 8, 24, 16), dtype=jnp.bfloat16)  # 6144 elems, 48 rows
    out3 = upd_gelu(x3, constant_param, min_pallas_elems=0)
    jax.block_until_ready(out3)
    assert out3.shape == x3.shape and out3.dtype == jnp.bfloat16
    assert jnp.allclose(out3.astype(jnp.float32),
                        ref_fn(x3.astype(jnp.float32)),
                        atol=2e-2, rtol=2e-2), "mismatch (bf16)"

    print("KERNEL_OK")
</pallas_src>

<mosaic_0001>
module attributes {stable_mosaic.version = 11 : i64} {
  func.func @_upd_gelu_kernel(%arg0: i32, %arg1: memref<1xf32, #tpu.memory_space<smem>>, %arg2: memref<16x128xf32, #tpu.memory_space<vmem>>, %arg3: memref<16x128xf32, #tpu.memory_space<vmem>>) attributes {dimension_semantics = [#tpu.dimension_semantics<parallel>], iteration_bounds = array<i64: 1>, scalar_prefetch = 0 : i64, scratch_operands = 0 : i64, tpu.core_type = #tpu.core_type<tc>, window_params = [{transform_indices = @transform_0, window_bounds = array<i64: 1>}, {transform_indices = @transform_1, window_bounds = array<i64: 16, 128>}, {transform_indices = @transform_2, window_bounds = array<i64: 16, 128>}]} {
    %c0 = arith.constant 0 : index
    %0 = memref.load %arg1[%c0] : memref<1xf32, #tpu.memory_space<smem>>
    %cst = arith.constant 5.000000e-01 : f32
    %1 = arith.mulf %cst, %0 : f32
    %c0_0 = arith.constant 0 : index
    %c0_1 = arith.constant 0 : index
    %2 = vector.load %arg2[%c0_0, %c0_1] : memref<16x128xf32, #tpu.memory_space<vmem>>, vector<16x128xf32>
    %cst_2 = arith.constant 5.000000e-01 : f32
    %3 = vector.broadcast %cst_2 : f32 to vector<16x128xf32>
    %4 = arith.mulf %3, %2 : vector<16x128xf32>
    %5 = vector.broadcast %1 : f32 to vector<16x128xf32>
    %6 = arith.mulf %5, %2 : vector<16x128xf32>
    %7 = math.tanh %6 : vector<16x128xf32>
    %8 = arith.mulf %4, %7 : vector<16x128xf32>
    %9 = arith.addf %8, %4 : vector<16x128xf32>
    %c0_3 = arith.constant 0 : index
    %c0_4 = arith.constant 0 : index
    %10 = vector.load %arg3[%c0_3, %c0_4] : memref<16x128xf32, #tpu.memory_space<vmem>>, vector<16x128xf32>
    tpu.vector_store %arg3[%c0_3, %c0_4], %9 {strides = array<i32>} : memref<16x128xf32, #tpu.memory_space<vmem>>, vector<16x128xf32>,
    return
  }
  func.func @transform_0(%arg0: i32) -> i32 {
    %c0_i32 = arith.constant 0 : i32
    %c0_i32_0 = arith.constant 0 : i32
    return %c0_i32 : i32
  }
  func.func @transform_1(%arg0: i32) -> (i32, i32) {
    %c0_i32 = arith.constant 0 : i32
    %c0_i32_0 = arith.constant 0 : i32
    return %arg0, %c0_i32 : i32, i32
  }
  func.func @transform_2(%arg0: i32) -> (i32, i32) {
    %c0_i32 = arith.constant 0 : i32
    %c0_i32_0 = arith.constant 0 : i32
    return %arg0, %c0_i32 : i32, i32
  }
}

</mosaic_0001>

<llo_original>
// kernel: tpu_custom_call.1
$region0: #{tpu_custom_call.1}
  #allocation0 [shape = 'u32[]', space=smem, size = 0x4, offset = 0x4, fixed_abs, tag = 'smem constant byte address 0x4 - core index']
  #allocation1 [shape = 'u32[144,128]{1,0:T(1,128)}', space=vmem, size = 0x12000, scoped, tag = 'internal scratch']
  #allocation2 [shape = 'f32[1]{0:T(128)S(6)}', space=smem, size = 0x200, scoped, tag = 'scoped memory for tpu_custom_call.1']
  %s0 = inlined_call_operand.<no memory space> [shape: f32[1], index: 0, kind: input, shape index: {}]
  %s1 = inlined_call_operand.hbm [shape: f32[16,128], index: 1, kind: input, shape index: {}]
  %s2 = inlined_call_operand.hbm [shape: f32[16,128], index: 2, kind: output, shape index: {}]
  %s3 = sld [smem:[#allocation0]]
  $region22: #{tpu_custom_call.1} parent=0
    _
  %s5 = ssub.s32 1, %s3
  %s6 = scalar_select 0, %s5, %s3
  %7 = sst [smem:[#allocation2]] %s0
  $region1: #{tpu_custom_call.1} parent=0
    #allocation3 [shape = 'u8[8192]{0}', space=vmem, size = 0x2000, scoped, tag = 'input window, operand 1, single buffered']
    #allocation4 [shape = 's32[1]{0}', space=sflag, size = 0x4, scoped, tag = 'scoped memory for tpu_custom_call.1']
    #allocation5 [shape = 's32[1]{0}', space=sflag, size = 0x4, scoped, tag = 'scoped memory for tpu_custom_call.1']
    #allocation6 [shape = 'u8[8192]{0}', space=vmem, size = 0x2000, scoped, tag = 'output window, operand 0, single buffered']
    %8 = vsyncpa [#allocation4], 0
    %9 = vsyncpa [#allocation5], 0
    // Predicated region
    $region2: #{tpu_custom_call.1} parent=1 // pred_check
      _
    $region3: #{tpu_custom_call.1} parent=1 // pred_check_branch
      %11 = sbr.rel (0) target = $region5
    $region4: #{tpu_custom_call.1} parent=1 // pred_region
      _
    $region5: #{tpu_custom_call.1} parent=1 // pred_fallthru
      _
    // Predicated region
    $region6: #{tpu_custom_call.1} parent=1 // pred_check
      _
    $region7: #{tpu_custom_call.1} parent=1 // pred_check_branch
      %13 = sbr.rel (0) target = $region9
    $region8: #{tpu_custom_call.1} parent=1 // pred_region
      %s15 = ssub.s32 256, 256
      %16 = vsyncadd [#allocation4], %s15
      %s17 = sshll.u32 [#allocation3], 4
      %s18 = int_to_ptr.vmem [resolvable:$true] %s17
      %23 = dma.hbm_to_vmem [thread:$0]  %s1, 256, %s18, [#allocation4], 128, 128, 8
    $region9: #{tpu_custom_call.1} parent=1 // pred_fallthru
      _
    // Predicated region
    $region10: #{tpu_custom_call.1} parent=1 // pred_check
      _
    $region11: #{tpu_custom_call.1} parent=1 // pred_check_branch
      %25 = sbr.rel (0) target = $region13
    $region12: #{tpu_custom_call.1} parent=1 // pred_region
      %26 = dma.done [#allocation4], 256
    $region13: #{tpu_custom_call.1} parent=1 // pred_fallthru
      _
    %s27 = sld [smem:[#allocation2]]
    %s28 = smul.f32 %s27, 0.5
    %v29 = vld [vmem:[#allocation3] sm:$0xff]
    %v30 = vld [vmem:[#allocation3 + $0x8] sm:$0xff]
    %v31 = vmul.f32 %v29, 0.5
    %v32 = vmul.f32 %v30, 0.5
    %v33 = vstv %s28
    %v34 = vmul.f32 %v33, %v29
    %v35 = vmul.f32 %v33, %v30
    %v36 = vtanh.pop %v34
    %v37 = vtanh.pop %v35
    %v38 = vmul.f32 %v31, %v36
    %v39 = vmul.f32 %v32, %v37
    %v40 = vadd.f32 %v38, %v31
    %v41 = vadd.f32 %v39, %v32
    %42 = vst [vmem:[#allocation6] sm:$0xff] %v40
    %43 = vst [vmem:[#allocation6 + $0x8] sm:$0xff] %v41
    // Predicated region
    $region14: #{tpu_custom_call.1} parent=1 // pred_check
      _
    $region15: #{tpu_custom_call.1} parent=1 // pred_check_branch
      %45 = sbr.rel (0) target = $region17
    $region16: #{tpu_custom_call.1} parent=1 // pred_region
      %s47 = ssub.s32 256, 256
      %48 = vsyncadd [#allocation5], %s47
      %s49 = sshll.u32 [#allocation6], 4
      %s50 = int_to_ptr.vmem [resolvable:$true] %s49
      %55 = dma.vmem_to_hbm [thread:$0]  %s50, 256, %s2, [#allocation5], 128, 128, 8
    $region17: #{tpu_custom_call.1} parent=1 // pred_fallthru
      _
    // Predicated region
    $region18: #{tpu_custom_call.1} parent=1 // pred_check
      _
    $region19: #{tpu_custom_call.1} parent=1 // pred_check_branch
      %57 = sbr.rel (0) target = $region21
    $region20: #{tpu_custom_call.1} parent=1 // pred_region
      %58 = dma.done [#allocation5], 256
    $region21: #{tpu_custom_call.1} parent=1 // pred_fallthru
      _
    %59 = vsyncpa [#allocation4], 1
    %60 = vsyncpa [#allocation5], 1

</llo_original>
